<compile_context>
chip_gen: v6e
topology: v6e:2x2x1
jax: 0.10.0
libtpu: 0.0.40
codegen_flags: <defaults>
</compile_context>

<pallas_src>
import jax
import jax.numpy as jnp
from jax import lax
from jax.experimental import pallas as pl
from jax.experimental.pallas import tpu as pltpu


def relation_kernel(zq_ref, hc_ref, w1a_ref, w2_ref, b2_ref, out_ref):
    C = out_ref.shape[0]
    D = w1a_ref.shape[0]

    # fc1 query half on the MXU with the query axis on lanes:
    # (D_out, D_in) contracted with (tq, D_in) -> (D, tq).  No transposes; the
    # MXU consumes the transposed operand natively.
    hqT = lax.dot_general(
        w1a_ref[...], zq_ref[...], (((1,), (1,)), ((), ())),
        preferred_element_type=jnp.float32)                     # (D, tq)

    w2 = w2_ref[...]                                            # (1, D), hoisted
    rows = []
    for c in range(C):                                          # C tiny & static
        # Grid-invariant class activations (b1 already folded in): static
        # sublane slice -> (D, 1), then lane-broadcast against hqT.
        hc_col = hc_ref[pl.ds(c * D, D), :]                     # (D, 1)
        slab = jnp.maximum(hqT + hc_col, 0.0)                   # (D, tq), lanes full
        # fc2 reduce on the idle MXU: (1, D) @ (D, tq) -> (1, tq), lane-dense.
        rows.append(lax.dot_general(
            w2, slab, (((1,), (0,)), ((), ())),
            preferred_element_type=jnp.float32))
    out_t = jnp.concatenate(rows, axis=0)                       # (C, tq)
    out_ref[...] = (out_t + b2_ref[0, 0]).astype(out_ref.dtype)


def _scoped_vmem_limit_bytes():
    """Half of physical VMEM: ~64 MiB on v5e/v6e (128 MiB parts), 32 MiB on v7x."""
    try:
        cap = int(pltpu.get_tpu_info().vmem_capacity_bytes)
    except Exception:
        cap = 64 * 1024 * 1024          # conservative default: v7x per-core VMEM
    return max(16 * 1024 * 1024, min(cap // 2, 96 * 1024 * 1024))


def _auto_tq(N, C, D, zq_itemsize, vmem_limit_bytes):
    n128 = pl.cdiv(N, 128) * 128
    # Grid-invariant resident blocks (budget 2 buffers each to be safe).
    resident = 2 * 4 * (D * D + C * D + D + 1)
    # Bytes per query column: double-buffered z_q tile + output block, plus the
    # in-kernel f32 intermediates (hqT, live slab + headroom, (C, tq) result).
    per_q = 2 * D * zq_itemsize + 2 * C * 4 + (3 * D + C) * 4
    budget = int(vmem_limit_bytes * 0.75) - resident
    tq = (max(budget, 0) // max(per_q, 1)) // 128 * 128
    tq = max(128, min(tq, 1024))            # 512-1024 is the measured sweet spot
    # Keep >= 2 (up to 4) grid steps when N allows: pipeliner overlap + work for
    # v7x's second TensorCore (grid axis is marked "parallel").
    steps_wanted = min(4, max(1, n128 // 128))
    tq = min(tq, max(128, (n128 // steps_wanted) // 128 * 128))
    return min(tq, n128)


def relation_forward(z_q, z_c, w1, b1, w2, b2, *, tq=None):
    """z_q: (N, D), z_c: (C, D); w1: (D, 2D), b1: (D,), w2: (1, D), b2: (1,)."""
    N, D = z_q.shape
    C, _ = z_c.shape

    vmem_limit = _scoped_vmem_limit_bytes()
    if tq is None:
        tq = _auto_tq(N, C, D, z_q.dtype.itemsize, vmem_limit)

    n_pad = pl.cdiv(N, tq) * tq
    if n_pad != N:
        # Padded query rows are computed and sliced off below (cheap at the
        # sizes this head sees).
        z_q = jnp.pad(z_q, ((0, n_pad - N), (0, 0)))

    # Parameter plumbing (PyTorch (out, in) layout kept, no big transposes).
    w1a = w1[:, :D]                                            # acts on z_q
    w1b = w1[:, D:]                                            # acts on z_c
    # Grid-invariant class-half activations with b1 folded in, computed ONCE,
    # flattened to (C*D, 1) so the kernel takes static sublane slices with the
    # fc1 output dim on sublanes.
    hc = jnp.dot(z_c, w1b.T, preferred_element_type=jnp.float32) + b1   # (C, D)
    hc_flat = hc.astype(jnp.float32).reshape(C * D, 1)
    w2_2d = w2.reshape(1, D)
    b2_2d = b2.reshape(1, 1)

    const = lambda i: (0, 0)
    out_t = pl.pallas_call(
        relation_kernel,
        out_shape=jax.ShapeDtypeStruct((C, n_pad), z_q.dtype),
        grid=(n_pad // tq,),
        in_specs=[
            pl.BlockSpec((tq, D), lambda i: (i, 0)),           # z_q tile (pipelined)
            pl.BlockSpec((C * D, 1), const),                   # hc (resident)
            pl.BlockSpec((D, D), const),                       # W1 query half (resident)
            pl.BlockSpec((1, D), const),                       # w2 (resident)
            pl.BlockSpec(memory_space=pltpu.MemorySpace.SMEM), # b2 scalar
        ],
        out_specs=pl.BlockSpec((C, tq), lambda i: (0, i)),
        compiler_params=pltpu.CompilerParams(
            dimension_semantics=("parallel",),
            vmem_limit_bytes=vmem_limit,
        ),
    )(z_q, hc_flat, w1a, w2_2d, b2_2d)

    # Drop query padding and transpose the tiny (C, N) slab back to (N, C).
    return out_t[:, :N].T


def relation_reference(z_q, z_c, w1, b1, w2, b2):
    """Pure-JAX reference matching the PyTorch forward (eval mode)."""
    N, D = z_q.shape
    C, _ = z_c.shape
    q_rep = jnp.repeat(z_q, C, axis=0)             # q0,q0,...,q1,q1,...
    c_rep = jnp.tile(z_c, (N, 1))                  # c0,c1,...,c0,c1,...
    cat = jnp.concatenate([q_rep, c_rep], axis=1)  # (N*C, 2D)
    h = jnp.maximum(cat @ w1.T + b1, 0.0)
    out = h @ w2.T + b2
    return out.reshape(N, C)


if __name__ == "__main__":
    key = jax.random.PRNGKey(0)
    k_zq, k_zc, k_w1, k_b1, k_w2, k_b2 = jax.random.split(key, 6)

    n_query, n_class, input_dim = 256, 4, 32
    z_q = jax.random.normal(k_zq, (n_query, input_dim), dtype=jnp.float32)
    z_c = jax.random.normal(k_zc, (n_class, input_dim), dtype=jnp.float32)

    # Deterministic parameter init (matches nn.Linear shapes).
    bound1 = 1.0 / jnp.sqrt(2.0 * input_dim)
    w1 = jax.random.uniform(k_w1, (input_dim, 2 * input_dim),
                            minval=-bound1, maxval=bound1, dtype=jnp.float32)
    b1 = jax.random.uniform(k_b1, (input_dim,),
                            minval=-bound1, maxval=bound1, dtype=jnp.float32)
    bound2 = 1.0 / jnp.sqrt(float(input_dim))
    w2 = jax.random.uniform(k_w2, (1, input_dim),
                            minval=-bound2, maxval=bound2, dtype=jnp.float32)
    b2 = jax.random.uniform(k_b2, (1,),
                            minval=-bound2, maxval=bound2, dtype=jnp.float32)

    # Auto tq -> 128 at this size: a 2-step pipelined grid.
    out = relation_forward(z_q, z_c, w1, b1, w2, b2)
    out = jax.block_until_ready(out)

    ref = relation_reference(z_q, z_c, w1, b1, w2, b2)
    assert out.shape == (n_query, n_class)
    assert jnp.allclose(out, ref, atol=1e-4, rtol=1e-5), "mismatch vs reference"

    print("KERNEL_OK")
</pallas_src>

<mosaic_0001>
module attributes {stable_mosaic.version = 11 : i64} {
  func.func @relation_kernel(%arg0: i32, %arg1: memref<128x32xf32, #tpu.memory_space<vmem>>, %arg2: memref<128x1xf32, #tpu.memory_space<vmem>>, %arg3: memref<32x32xf32, #tpu.memory_space<vmem>>, %arg4: memref<1x32xf32, #tpu.memory_space<vmem>>, %arg5: memref<1x1xf32, #tpu.memory_space<smem>>, %arg6: memref<4x128xf32, #tpu.memory_space<vmem>>) attributes {dimension_semantics = [#tpu.dimension_semantics<parallel>], iteration_bounds = array<i64: 2>, scalar_prefetch = 0 : i64, scratch_operands = 0 : i64, tpu.core_type = #tpu.core_type<tc>, window_params = [{transform_indices = @transform_0, window_bounds = array<i64: 128, 32>}, {pipeline_mode = #tpu.pipeline_mode<synchronous>, transform_indices = @transform_1, window_bounds = array<i64: 128, 1>}, {pipeline_mode = #tpu.pipeline_mode<synchronous>, transform_indices = @transform_2, window_bounds = array<i64: 32, 32>}, {pipeline_mode = #tpu.pipeline_mode<synchronous>, transform_indices = @transform_3, window_bounds = array<i64: 1, 32>}, {transform_indices = @transform_4, window_bounds = array<i64: 1, 1>}, {transform_indices = @transform_5, window_bounds = array<i64: 4, 128>}]} {
    %c0 = arith.constant 0 : index
    %c0_0 = arith.constant 0 : index
    %0 = vector.load %arg3[%c0, %c0_0] : memref<32x32xf32, #tpu.memory_space<vmem>>, vector<32x32xf32>
    %c0_1 = arith.constant 0 : index
    %c0_2 = arith.constant 0 : index
    %1 = vector.load %arg1[%c0_1, %c0_2] : memref<128x32xf32, #tpu.memory_space<vmem>>, vector<128x32xf32>
    %cst = arith.constant dense<0.000000e+00> : vector<32x128xf32>
    %2 = tpu.matmul %0, %1, %cst {dimension_numbers = #tpu.dot_dimension_numbers<[1], [1], [0], [0], [0, 0, 1, 0], [], []>} : vector<32x32xf32>, vector<128x32xf32>, vector<32x128xf32> -> vector<32x128xf32>
    %c0_3 = arith.constant 0 : index
    %c0_4 = arith.constant 0 : index
    %3 = vector.load %arg4[%c0_3, %c0_4] : memref<1x32xf32, #tpu.memory_space<vmem>>, vector<1x32xf32>
    %c0_5 = arith.constant 0 : index
    %c0_6 = arith.constant 0 : index
    %4 = vector.load %arg2[%c0_5, %c0_6] : memref<128x1xf32, #tpu.memory_space<vmem>>, vector<32x1xf32>
    %5 = vector.broadcast %4 : vector<32x1xf32> to vector<32x128xf32>
    %6 = arith.addf %2, %5 : vector<32x128xf32>
    %cst_7 = arith.constant 0.000000e+00 : f32
    %7 = vector.broadcast %cst_7 : f32 to vector<32x128xf32>
    %8 = arith.maximumf %6, %7 : vector<32x128xf32>
    %cst_8 = arith.constant dense<0.000000e+00> : vector<1x128xf32>
    %9 = tpu.matmul %3, %8, %cst_8 {dimension_numbers = #tpu.dot_dimension_numbers<[1], [0], [0], [1], [0, 0, 1, 1], [], []>} : vector<1x32xf32>, vector<32x128xf32>, vector<1x128xf32> -> vector<1x128xf32>
    %c32 = arith.constant 32 : index
    %c0_9 = arith.constant 0 : index
    %10 = vector.load %arg2[%c32, %c0_9] : memref<128x1xf32, #tpu.memory_space<vmem>>, vector<32x1xf32>
    %11 = vector.broadcast %10 : vector<32x1xf32> to vector<32x128xf32>
    %12 = arith.addf %2, %11 : vector<32x128xf32>
    %cst_10 = arith.constant 0.000000e+00 : f32
    %13 = vector.broadcast %cst_10 : f32 to vector<32x128xf32>
    %14 = arith.maximumf %12, %13 : vector<32x128xf32>
    %cst_11 = arith.constant dense<0.000000e+00> : vector<1x128xf32>
    %15 = tpu.matmul %3, %14, %cst_11 {dimension_numbers = #tpu.dot_dimension_numbers<[1], [0], [0], [1], [0, 0, 1, 1], [], []>} : vector<1x32xf32>, vector<32x128xf32>, vector<1x128xf32> -> vector<1x128xf32>
    %c64 = arith.constant 64 : index
    %c0_12 = arith.constant 0 : index
    %16 = vector.load %arg2[%c64, %c0_12] : memref<128x1xf32, #tpu.memory_space<vmem>>, vector<32x1xf32>
    %17 = vector.broadcast %16 : vector<32x1xf32> to vector<32x128xf32>
    %18 = arith.addf %2, %17 : vector<32x128xf32>
    %cst_13 = arith.constant 0.000000e+00 : f32
    %19 = vector.broadcast %cst_13 : f32 to vector<32x128xf32>
    %20 = arith.maximumf %18, %19 : vector<32x128xf32>
    %cst_14 = arith.constant dense<0.000000e+00> : vector<1x128xf32>
    %21 = tpu.matmul %3, %20, %cst_14 {dimension_numbers = #tpu.dot_dimension_numbers<[1], [0], [0], [1], [0, 0, 1, 1], [], []>} : vector<1x32xf32>, vector<32x128xf32>, vector<1x128xf32> -> vector<1x128xf32>
    %c96 = arith.constant 96 : index
    %c0_15 = arith.constant 0 : index
    %22 = vector.load %arg2[%c96, %c0_15] : memref<128x1xf32, #tpu.memory_space<vmem>>, vector<32x1xf32>
    %23 = vector.broadcast %22 : vector<32x1xf32> to vector<32x128xf32>
    %24 = arith.addf %2, %23 : vector<32x128xf32>
    %cst_16 = arith.constant 0.000000e+00 : f32
    %25 = vector.broadcast %cst_16 : f32 to vector<32x128xf32>
    %26 = arith.maximumf %24, %25 : vector<32x128xf32>
    %cst_17 = arith.constant dense<0.000000e+00> : vector<1x128xf32>
    %27 = tpu.matmul %3, %26, %cst_17 {dimension_numbers = #tpu.dot_dimension_numbers<[1], [0], [0], [1], [0, 0, 1, 1], [], []>} : vector<1x32xf32>, vector<32x128xf32>, vector<1x128xf32> -> vector<1x128xf32>
    %28 = tpu.concatenate %9, %15, %21, %27 in 0 : vector<1x128xf32>, vector<1x128xf32>, vector<1x128xf32>, vector<1x128xf32> -> vector<4x128xf32>
    %c0_18 = arith.constant 0 : index
    %c0_19 = arith.constant 0 : index
    %29 = memref.load %arg5[%c0_18, %c0_19] : memref<1x1xf32, #tpu.memory_space<smem>>
    %30 = vector.broadcast %29 : f32 to vector<4x128xf32>
    %31 = arith.addf %28, %30 : vector<4x128xf32>
    %c0_20 = arith.constant 0 : index
    %c0_21 = arith.constant 0 : index
    %32 = vector.load %arg6[%c0_20, %c0_21] : memref<4x128xf32, #tpu.memory_space<vmem>>, vector<4x128xf32>
    tpu.vector_store %arg6[%c0_20, %c0_21], %31 {strides = array<i32>} : memref<4x128xf32, #tpu.memory_space<vmem>>, vector<4x128xf32>,
    return
  }
  func.func @transform_0(%arg0: i32) -> (i32, i32) {
    %c0_i32 = arith.constant 0 : i32
    %c0_i32_0 = arith.constant 0 : i32
    return %arg0, %c0_i32 : i32, i32
  }
  func.func @transform_1(%arg0: i32) -> (i32, i32) {
    %c0_i32 = arith.constant 0 : i32
    %c0_i32_0 = arith.constant 0 : i32
    %c0_i32_1 = arith.constant 0 : i32
    return %c0_i32, %c0_i32_0 : i32, i32
  }
  func.func @transform_2(%arg0: i32) -> (i32, i32) {
    %c0_i32 = arith.constant 0 : i32
    %c0_i32_0 = arith.constant 0 : i32
    %c0_i32_1 = arith.constant 0 : i32
    return %c0_i32, %c0_i32_0 : i32, i32
  }
  func.func @transform_3(%arg0: i32) -> (i32, i32) {
    %c0_i32 = arith.constant 0 : i32
    %c0_i32_0 = arith.constant 0 : i32
    %c0_i32_1 = arith.constant 0 : i32
    return %c0_i32, %c0_i32_0 : i32, i32
  }
  func.func @transform_4(%arg0: i32) -> (i32, i32) {
    %c0_i32 = arith.constant 0 : i32
    %c0_i32_0 = arith.constant 0 : i32
    %c0_i32_1 = arith.constant 0 : i32
    return %c0_i32, %c0_i32_0 : i32, i32
  }
  func.func @transform_5(%arg0: i32) -> (i32, i32) {
    %c0_i32 = arith.constant 0 : i32
    %c0_i32_0 = arith.constant 0 : i32
    return %c0_i32, %arg0 : i32, i32
  }
}

</mosaic_0001>

<llo_original>
// kernel: tpu_custom_call.1
$region0: #{tpu_custom_call.1}
  #allocation0 [shape = 'u32[]', space=smem, size = 0x4, offset = 0x4, fixed_abs, tag = 'smem constant byte address 0x4 - core index']
  #allocation1 [shape = 'u32[144,128]{1,0:T(1,128)}', space=vmem, size = 0x12000, scoped, tag = 'internal scratch']
  #allocation2 [shape = 'f32[1,1]{1,0:T(1,128)S(6)}', space=smem, size = 0x200, scoped, tag = 'scoped memory for tpu_custom_call.1']
  %s0 = inlined_call_operand.vmem [shape: f32[256,32], index: 0, kind: input, shape index: {}]
  %s1 = inlined_call_operand.vmem [shape: f32[128,1], index: 1, kind: input, shape index: {}]
  %s2 = inlined_call_operand.vmem [shape: f32[32,32], index: 2, kind: input, shape index: {}]
  %s3 = inlined_call_operand.vmem [shape: f32[1,32], index: 3, kind: input, shape index: {}]
  %s4 = inlined_call_operand.<no memory space> [shape: f32[1,1], index: 4, kind: input, shape index: {}]
  %s5 = inlined_call_operand.hbm [shape: f32[4,256], index: 5, kind: output, shape index: {}]
  %s6 = sld [smem:[#allocation0]]
  $region53: #{tpu_custom_call.1} parent=0
    _
  %s8 = ssub.s32 1, %s6
  %s9 = scalar_select 0, %s8, %s6
  %10 = sst [smem:[#allocation2]] %s4
  $region1: #{tpu_custom_call.1} parent=0
    #allocation3 [shape = 'u8[4096]{0}', space=vmem, size = 0x1000, scoped, tag = 'output window, operand 0']
    #allocation4 [shape = 's32[2]{0}', space=sflag, size = 0x8, scoped, tag = 'scoped memory for tpu_custom_call.1']
    %11 = vsyncpa [#allocation4], 0
    %s12 = scalar_lea.sflag [#allocation4], 1
    %13 = vsyncpa %s12, 0
    loop: start=0, step=1, limit=4
    $region2: #{tpu_custom_call.1} parent=1 // loop_pre_header
      _
    $region3: #{tpu_custom_call.1} parent=1 // loop_header
      %s15 = sphi 0, %s19
      %p16 = scmp.ge.s32.totalorder %s15, 4
      %s25 = sphi 0, %s27
      %s28 = sphi 0, %s25
      %s29 = sphi 0, %s28
      %s45 = sphi 0, %s29
      %s49 = sphi 0, %s49
      %s51 = sphi 0, %s49
      %s52 = sphi 0, %s51
      %s66 = sphi 0, %s52
      %s70 = sphi 0, %s70
      %s72 = sphi 0, %s70
      %s73 = sphi 0, %s72
      %s87 = sphi 0, %s73
      %s91 = sphi 0, %s91
      %s93 = sphi 0, %s91
      %s94 = sphi 0, %s93
      %s108 = sphi 0, %s94
      %s112 = sphi 0, %s112
      %s114 = sphi 0, %s112
      %s115 = sphi 0, %s114
      %s129 = sphi 0, %s115
      %s135 = sphi 0, %s137
      %s138 = sphi 0, %s135
      %s139 = sphi 0, %s138
      %s155 = sphi 0, %s139
    $region4: #{tpu_custom_call.1} parent=1 // loop_header_branch
      %18 = sbr.rel (%p16) target = $region8
    $region5: #{tpu_custom_call.1} parent=1 // loop_body
      %s20 = ssub.s32 %s15, 1
      %s21 = ssub.s32 %s15, 2
      %s22 = sadd.s32 %s15, 1
      %s23 = ssub.s32 %s15, %s22
      %p24 = scmp.eq.s32.totalorder %s23, 0
      %s26 = sadd.s32 %s25, 1
      %s27 = scalar_select %p24, %s25, %s26
      %p30 = pneg %p24
      %p31 = scmp.eq.s32.totalorder %s15, 1
      %p32 = por %p30, %p31
      %p33 = scmp.ne.s32.totalorder %s25, %s28
      %p34 = scmp.eq.s32.totalorder %s15, 0
      %p35 = por %p33, %p34
      %p36 = scmp.ne.s32.totalorder %s25, %s28
      %p37 = scmp.eq.s32.totalorder %s20, 1
      %p38 = por %p36, %p37
      %p39 = scmp.ne.s32.totalorder %s28, %s29
      %p40 = scmp.eq.s32.totalorder %s20, 0
      %p41 = por %p39, %p40
      %p42 = scmp.ne.s32.totalorder %s28, %s29
      %p43 = scmp.eq.s32.totalorder %s21, 1
      %p44 = por %p42, %p43
      %p46 = scmp.ne.s32.totalorder %s29, %s45
      %p47 = scmp.eq.s32.totalorder %s21, 0
      %p48 = por %p46, %p47
      %s50 = sadd.s32 %s49, 1
      %p53 = scmp.eq.s32.totalorder %s15, 1
      %p54 = scmp.ne.s32.totalorder %s49, %s51
      %p55 = scmp.eq.s32.totalorder %s15, 0
      %p56 = por %p54, %p55
      %p57 = scmp.ne.s32.totalorder %s49, %s51
      %p58 = scmp.eq.s32.totalorder %s20, 1
      %p59 = por %p57, %p58
      %p60 = scmp.ne.s32.totalorder %s51, %s52
      %p61 = scmp.eq.s32.totalorder %s20, 0
      %p62 = por %p60, %p61
      %p63 = scmp.ne.s32.totalorder %s51, %s52
      %p64 = scmp.eq.s32.totalorder %s21, 1
      %p65 = por %p63, %p64
      %p67 = scmp.ne.s32.totalorder %s52, %s66
      %p68 = scmp.eq.s32.totalorder %s21, 0
      %p69 = por %p67, %p68
      %s71 = sadd.s32 %s70, 1
      %p74 = scmp.eq.s32.totalorder %s15, 1
      %p75 = scmp.ne.s32.totalorder %s70, %s72
      %p76 = scmp.eq.s32.totalorder %s15, 0
      %p77 = por %p75, %p76
      %p78 = scmp.ne.s32.totalorder %s70, %s72
      %p79 = scmp.eq.s32.totalorder %s20, 1
      %p80 = por %p78, %p79
      %p81 = scmp.ne.s32.totalorder %s72, %s73
      %p82 = scmp.eq.s32.totalorder %s20, 0
      %p83 = por %p81, %p82
      %p84 = scmp.ne.s32.totalorder %s72, %s73
      %p85 = scmp.eq.s32.totalorder %s21, 1
      %p86 = por %p84, %p85
      %p88 = scmp.ne.s32.totalorder %s73, %s87
      %p89 = scmp.eq.s32.totalorder %s21, 0
      %p90 = por %p88, %p89
      %s92 = sadd.s32 %s91, 1
      %p95 = scmp.eq.s32.totalorder %s15, 1
      %p96 = scmp.ne.s32.totalorder %s91, %s93
      %p97 = scmp.eq.s32.totalorder %s15, 0
      %p98 = por %p96, %p97
      %p99 = scmp.ne.s32.totalorder %s91, %s93
      %p100 = scmp.eq.s32.totalorder %s20, 1
      %p101 = por %p99, %p100
      %p102 = scmp.ne.s32.totalorder %s93, %s94
      %p103 = scmp.eq.s32.totalorder %s20, 0
      %p104 = por %p102, %p103
      %p105 = scmp.ne.s32.totalorder %s93, %s94
      %p106 = scmp.eq.s32.totalorder %s21, 1
      %p107 = por %p105, %p106
      %p109 = scmp.ne.s32.totalorder %s94, %s108
      %p110 = scmp.eq.s32.totalorder %s21, 0
      %p111 = por %p109, %p110
      %s113 = sadd.s32 %s112, 1
      %p116 = scmp.eq.s32.totalorder %s15, 1
      %p117 = scmp.ne.s32.totalorder %s112, %s114
      %p118 = scmp.eq.s32.totalorder %s15, 0
      %p119 = por %p117, %p118
      %p120 = scmp.ne.s32.totalorder %s112, %s114
      %p121 = scmp.eq.s32.totalorder %s20, 1
      %p122 = por %p120, %p121
      %p123 = scmp.ne.s32.totalorder %s114, %s115
      %p124 = scmp.eq.s32.totalorder %s20, 0
      %p125 = por %p123, %p124
      %p126 = scmp.ne.s32.totalorder %s114, %s115
      %p127 = scmp.eq.s32.totalorder %s21, 1
      %p128 = por %p126, %p127
      %p130 = scmp.ne.s32.totalorder %s115, %s129
      %p131 = scmp.eq.s32.totalorder %s21, 0
      %p132 = por %p130, %p131
      %s133 = ssub.s32 %s15, %s22
      %p134 = scmp.eq.s32.totalorder %s133, 0
      %s136 = sadd.s32 %s135, 1
      %s137 = scalar_select %p134, %s135, %s136
      %p140 = pneg %p134
      %p141 = scmp.eq.s32.totalorder %s15, 1
      %p142 = por %p140, %p141
      %p143 = scmp.ne.s32.totalorder %s135, %s138
      %p144 = scmp.eq.s32.totalorder %s15, 0
      %p145 = por %p143, %p144
      %p146 = scmp.ne.s32.totalorder %s135, %s138
      %p147 = scmp.eq.s32.totalorder %s20, 1
      %p148 = por %p146, %p147
      %p149 = scmp.ne.s32.totalorder %s138, %s139
      %p150 = scmp.eq.s32.totalorder %s20, 0
      %p151 = por %p149, %p150
      %p152 = scmp.ne.s32.totalorder %s138, %s139
      %p153 = scmp.eq.s32.totalorder %s21, 1
      %p154 = por %p152, %p153
      %p156 = scmp.ne.s32.totalorder %s139, %s155
      %p157 = scmp.eq.s32.totalorder %s21, 0
      %p158 = por %p156, %p157
      %p159 = scmp.le.s32.totalorder 1, %s15
      %p160 = scmp.lt.s32.totalorder %s15, 3
      %p161 = pnand %p159, %p160
      %p162 = pneg %p161
      // Predicated region
      $region9: #{tpu_custom_call.1} parent=5 // pred_check
        _
      $region10: #{tpu_custom_call.1} parent=5 // pred_check_branch
        %164 = sbr.rel (%p161) target = $region12
      $region11: #{tpu_custom_call.1} parent=5 // pred_region
        %s165 = ssub.s32 %s15, 1
        // Predicated region
        $region13: #{tpu_custom_call.1} parent=11 // pred_check
          %p166 = pneg %p62
        $region14: #{tpu_custom_call.1} parent=11 // pred_check_branch
          %168 = sbr.rel (%p166) target = $region16
        $region15: #{tpu_custom_call.1} parent=11 // pred_region
          _
        $region16: #{tpu_custom_call.1} parent=11 // pred_fallthru
          _
        // Predicated region
        $region17: #{tpu_custom_call.1} parent=11 // pred_check
          %p169 = pneg %p83
        $region18: #{tpu_custom_call.1} parent=11 // pred_check_branch
          %171 = sbr.rel (%p169) target = $region20
        $region19: #{tpu_custom_call.1} parent=11 // pred_region
          _
        $region20: #{tpu_custom_call.1} parent=11 // pred_fallthru
          _
        // Predicated region
        $region21: #{tpu_custom_call.1} parent=11 // pred_check
          %p172 = pneg %p104
        $region22: #{tpu_custom_call.1} parent=11 // pred_check_branch
          %174 = sbr.rel (%p172) target = $region24
        $region23: #{tpu_custom_call.1} parent=11 // pred_region
          _
        $region24: #{tpu_custom_call.1} parent=11 // pred_fallthru
          _
        // Predicated region
        $region25: #{tpu_custom_call.1} parent=11 // pred_check
          %p175 = pneg %p125
        $region26: #{tpu_custom_call.1} parent=11 // pred_check_branch
          %177 = sbr.rel (%p175) target = $region28
        $region27: #{tpu_custom_call.1} parent=11 // pred_region
          _
        $region28: #{tpu_custom_call.1} parent=11 // pred_fallthru
          _
      $region12: #{tpu_custom_call.1} parent=5 // pred_fallthru
        _
      %p178 = scmp.lt.s32.totalorder %s15, 2
      // Predicated region
      $region29: #{tpu_custom_call.1} parent=5 // pred_check
        %p179 = pneg %p178
      $region30: #{tpu_custom_call.1} parent=5 // pred_check_branch
        %181 = sbr.rel (%p179) target = $region32
      $region31: #{tpu_custom_call.1} parent=5 // pred_region
        // Predicated region
        $region33: #{tpu_custom_call.1} parent=31 // pred_check
          %p182 = pneg %p35
        $region34: #{tpu_custom_call.1} parent=31 // pred_check_branch
          %184 = sbr.rel (%p182) target = $region36
        $region35: #{tpu_custom_call.1} parent=31 // pred_region
          %s185 = smul.u32 16, %s15
          %p186 = scmp.lt.s32.totalorder %s185, 31
          %s187 = scalar_select %p186, %s185, 31
          %s188 = smul.addr %s187, 8
          %s189 = scalar_lea.vmem %s0, %s188
          %s190 = smul.u32 16, %s15
        $region36: #{tpu_custom_call.1} parent=31 // pred_fallthru
          _
      $region32: #{tpu_custom_call.1} parent=5 // pred_fallthru
        _
      %p191 = scmp.le.s32.totalorder 1, %s15
      %p192 = scmp.lt.s32.totalorder %s15, 3
      %p193 = pnand %p191, %p192
      %p194 = pneg %p193
      // Predicated region
      $region37: #{tpu_custom_call.1} parent=5 // pred_check
        _
      $region38: #{tpu_custom_call.1} parent=5 // pred_check_branch
        %196 = sbr.rel (%p193) target = $region40
      $region39: #{tpu_custom_call.1} parent=5 // pred_region
        %s197 = ssub.s32 %s15, 1
        %s198 = smul.u32 16, %s20
        %p199 = scmp.lt.s32.totalorder %s198, 31
        %s200 = scalar_select %p199, %s198, 31
        %s201 = smul.addr %s200, 8
        %s202 = scalar_lea.vmem %s0, %s201
        %p203 = pneg %p41
        %p204 = pneg %p38
        %p205 = pneg %p62
        %p206 = pneg %p59
        %p207 = pneg %p83
        %p208 = pneg %p80
        %p209 = pneg %p104
        %p210 = pneg %p101
        %p211 = pneg %p125
        %p212 = pneg %p122
        %p213 = pneg %p151
        %p214 = pneg %p148
        %s215 = sand.u32 %s138, 1
        %s216 = scalar_lea.sflag [#allocation4], %s215
        %s217 = sand.u32 %s138, 1
        %s218 = smul.addr %s217, 4
        %s219 = scalar_lea.vmem [#allocation3], %s218
        %s220 = smul.u32 16, %s20
        %p221 = scmp.lt.s32.totalorder %s220, 31
        %s222 = scalar_select %p221, %s220, 31
        %s223 = smul.addr %s222, 8
        %s224 = scalar_lea.vmem %s0, %s223
        %s225 = smul.u32 16, %s20
        %v226 = vld [vmem:[%s2] sm:$0xff]
        %v227 = vld [vmem:[%s2 + $0x8] sm:$0xff]
        %v228 = vld [vmem:[%s2 + $0x10] sm:$0xff]
        %v229 = vld [vmem:[%s2 + $0x18] sm:$0xff]
        %v230 = vld [vmem:[%s224] sm:$0xff]
        %v231 = vld [vmem:[%s224 + $0x8] sm:$0xff]
        %v232 = vld [vmem:[%s224 + $0x10] sm:$0xff]
        %v233 = vld [vmem:[%s224 + $0x18] sm:$0xff]
        %v234 = vld [vmem:[%s224 + $0x20] sm:$0xff]
        %v235 = vld [vmem:[%s224 + $0x28] sm:$0xff]
        %v236 = vld [vmem:[%s224 + $0x30] sm:$0xff]
        %v237 = vld [vmem:[%s224 + $0x38] sm:$0xff]
        %v238 = vld [vmem:[%s224 + $0x40] sm:$0xff]
        %v239 = vld [vmem:[%s224 + $0x48] sm:$0xff]
        %v240 = vld [vmem:[%s224 + $0x50] sm:$0xff]
        %v241 = vld [vmem:[%s224 + $0x58] sm:$0xff]
        %v242 = vld [vmem:[%s224 + $0x60] sm:$0xff]
        %v243 = vld [vmem:[%s224 + $0x68] sm:$0xff]
        %v244 = vld [vmem:[%s224 + $0x70] sm:$0xff]
        %v245 = vld [vmem:[%s224 + $0x78] sm:$0xff]
        %vm246 = vcmask 261120
        %v248 = vsel %vm246, %v226, 0
        %v251 = vsel %vm246, %v227, 0
        %v254 = vsel %vm246, %v228, 0
        %v257 = vsel %vm246, %v229, 0
        %v260 = vsel %vm246, %v230, 0
        %v263 = vsel %vm246, %v231, 0
        %v266 = vsel %vm246, %v232, 0
        %v269 = vsel %vm246, %v233, 0
        %v272 = vsel %vm246, %v234, 0
        %v275 = vsel %vm246, %v235, 0
        %v278 = vsel %vm246, %v236, 0
        %v281 = vsel %vm246, %v237, 0
        %v284 = vsel %vm246, %v238, 0
        %v287 = vsel %vm246, %v239, 0
        %v290 = vsel %vm246, %v240, 0
        %v293 = vsel %vm246, %v241, 0
        %v296 = vsel %vm246, %v242, 0
        %v299 = vsel %vm246, %v243, 0
        %v302 = vsel %vm246, %v244, 0
        %v305 = vsel %vm246, %v245, 0
        %307 = vmatprep.subr.mxu0 0.0
        %308 = vmatpush1.xpose.msra.mxu0 %v305
        %309 = vmatprep.subr.mxu0 0.0
        %310 = vmatpush1.xpose.msra.mxu0 %v302
        %311 = vmatprep.subr.mxu0 0.0
        %312 = vmatpush1.xpose.msra.mxu0 %v299
        %313 = vmatprep.subr.mxu0 0.0
        %314 = vmatpush1.xpose.msra.mxu0 %v296
        %315 = vmatprep.subr.mxu0 0.0
        %316 = vmatpush1.xpose.msra.mxu0 %v293
        %317 = vmatprep.subr.mxu0 0.0
        %318 = vmatpush1.xpose.msra.mxu0 %v290
        %319 = vmatprep.subr.mxu0 0.0
        %320 = vmatpush1.xpose.msra.mxu0 %v287
        %321 = vmatprep.subr.mxu0 0.0
        %322 = vmatpush1.xpose.msra.mxu0 %v284
        %323 = vmatprep.subr.mxu0 0.0
        %324 = vmatpush1.xpose.msra.mxu0 %v281
        %325 = vmatprep.subr.mxu0 0.0
        %326 = vmatpush1.xpose.msra.mxu0 %v278
        %327 = vmatprep.subr.mxu0 0.0
        %328 = vmatpush1.xpose.msra.mxu0 %v275
        %329 = vmatprep.subr.mxu0 0.0
        %330 = vmatpush1.xpose.msra.mxu0 %v272
        %331 = vmatprep.subr.mxu0 0.0
        %332 = vmatpush1.xpose.msra.mxu0 %v269
        %333 = vmatprep.subr.mxu0 0.0
        %334 = vmatpush1.xpose.msra.mxu0 %v266
        %335 = vmatprep.subr.mxu0 0.0
        %336 = vmatpush1.xpose.msra.mxu0 %v263
        %337 = vmatprep.subr.mxu0 0.0
        %338 = vmatpush1.xpose.msra.mxu0 %v260
        %339 = vmatprep.subr.mxu0 0.0
        %340 = vmatpush2.xpose.msra.mxu0 0.0
        %341 = vmatprep.subr.mxu0 0.0
        %342 = vmatpush2.xpose.msra.mxu0 0.0
        %343 = vmatprep.subr.mxu0 0.0
        %344 = vmatpush2.xpose.msra.mxu0 0.0
        %345 = vmatprep.subr.mxu0 0.0
        %346 = vmatpush2.xpose.msra.mxu0 0.0
        %347 = vmatprep.subr.mxu0 0.0
        %348 = vmatpush2.xpose.msra.mxu0 0.0
        %349 = vmatprep.subr.mxu0 0.0
        %350 = vmatpush2.xpose.msra.mxu0 0.0
        %351 = vmatprep.subr.mxu0 0.0
        %352 = vmatpush2.xpose.msra.mxu0 0.0
        %353 = vmatprep.subr.mxu0 0.0
        %354 = vmatpush2.xpose.msra.mxu0 0.0
        %355 = vmatprep.subr.mxu0 0.0
        %356 = vmatpush2.xpose.msra.mxu0 0.0
        %357 = vmatprep.subr.mxu0 0.0
        %358 = vmatpush2.xpose.msra.mxu0 0.0
        %359 = vmatprep.subr.mxu0 0.0
        %360 = vmatpush2.xpose.msra.mxu0 0.0
        %361 = vmatprep.subr.mxu0 0.0
        %362 = vmatpush2.xpose.msra.mxu0 0.0
        %363 = vmatprep.subr.mxu0 0.0
        %364 = vmatpush2.xpose.msra.mxu0 0.0
        %365 = vmatprep.subr.mxu0 0.0
        %366 = vmatpush2.xpose.msra.mxu0 0.0
        %367 = vmatprep.subr.mxu0 0.0
        %368 = vmatpush2.xpose.msra.mxu0 0.0
        %369 = vmatprep.subr.mxu0 0.0
        %370 = vmatpush2.xpose.msra.mxu0 0.0
        %371 = vmatprep.mubr.f32.mxu0 0.0
        %372 = vmatmul.mubr.f32.gmra.mxu0 %v248
        %v373 = vpop.f32.mrf.mxu0
        %v374 = vadd.f32 0.0, %v373
        %v375 = vpop.f32.mrf.mxu0
        %376 = vmatprep.mubr.f32.mxu0 0.0
        %377 = vmatmul.mubr.f32.gmra.mxu0 %v251
        %v378 = vpop.f32.mrf.mxu0
        %v379 = vadd.f32 0.0, %v378
        %v380 = vpop.f32.mrf.mxu0
        %381 = vmatprep.mubr.f32.mxu0 0.0
        %382 = vmatmul.mubr.f32.gmra.mxu0 %v254
        %v383 = vpop.f32.mrf.mxu0
        %v384 = vadd.f32 0.0, %v383
        %v385 = vpop.f32.mrf.mxu0
        %386 = vmatprep.mubr.f32.mxu0 0.0
        %387 = vmatmul.mubr.f32.gmra.mxu0 %v257
        %v388 = vpop.f32.mrf.mxu0
        %v389 = vadd.f32 0.0, %v388
        %v390 = vpop.f32.mrf.mxu0
        %391 = vdwg.mxu0
        %v392 = vld [vmem:[%s3] sm:$0x1]
        %v393 = vld [vmem:[%s1] sm:$0xff]
        %v394 = vld [vmem:[%s1 + $0x8] sm:$0xff]
        %v395 = vld [vmem:[%s1 + $0x10] sm:$0xff]
        %v396 = vld [vmem:[%s1 + $0x18] sm:$0xff]
        %398 = vset.pattern.permute.xlu0 0
        %399 = vperm.xlu0 %398, %v393
        %v400 = vpop.permute.xlu0 %399
        %403 = vset.pattern.permute.xlu0 0
        %404 = vperm.xlu0 %403, %v394
        %v405 = vpop.permute.xlu0 %404
        %408 = vset.pattern.permute.xlu0 0
        %409 = vperm.xlu0 %408, %v395
        %v410 = vpop.permute.xlu0 %409
        %413 = vset.pattern.permute.xlu0 0
        %414 = vperm.xlu0 %413, %v396
        %v415 = vpop.permute.xlu0 %414
        %v417 = vadd.f32 %v374, %v400
        %v418 = vadd.f32 %v379, %v405
        %v419 = vadd.f32 %v384, %v410
        %v420 = vadd.f32 %v389, %v415
        %v421 = vmax.f32 %v417, 0.0
        %v422 = vmax.f32 %v418, 0.0
        %v423 = vmax.f32 %v419, 0.0
        %v424 = vmax.f32 %v420, 0.0
        %v426 = vsel %vm246, %v392, 0
        %428 = vmatprep.subr.mxu0 0.0
        %429 = vmatpush1.msra.mxu0 0.0
        %430 = vmatprep.subr.mxu0 0.0
        %431 = vmatpush1.msra.mxu0 0.0
        %432 = vmatprep.subr.mxu0 0.0
        %433 = vmatpush1.msra.mxu0 0.0
        %434 = vmatprep.subr.mxu0 0.0
        %435 = vmatpush1.msra.mxu0 0.0
        %436 = vmatprep.subr.mxu0 0.0
        %437 = vmatpush1.msra.mxu0 0.0
        %438 = vmatprep.subr.mxu0 0.0
        %439 = vmatpush1.msra.mxu0 0.0
        %440 = vmatprep.subr.mxu0 0.0
        %441 = vmatpush1.msra.mxu0 0.0
        %442 = vmatprep.subr.mxu0 0.0
        %443 = vmatpush1.msra.mxu0 0.0
        %444 = vmatprep.subr.mxu0 0.0
        %445 = vmatpush1.msra.mxu0 0.0
        %446 = vmatprep.subr.mxu0 0.0
        %447 = vmatpush1.msra.mxu0 0.0
        %448 = vmatprep.subr.mxu0 0.0
        %449 = vmatpush1.msra.mxu0 0.0
        %450 = vmatprep.subr.mxu0 0.0
        %451 = vmatpush1.msra.mxu0 0.0
        %452 = vmatprep.subr.mxu0 0.0
        %453 = vmatpush1.msra.mxu0 %v424
        %454 = vmatprep.subr.mxu0 0.0
        %455 = vmatpush1.msra.mxu0 %v423
        %456 = vmatprep.subr.mxu0 0.0
        %457 = vmatpush1.msra.mxu0 %v422
        %458 = vmatprep.subr.mxu0 0.0
        %459 = vmatpush1.msra.mxu0 %v421
        %460 = vmatprep.subr.mxu0 0.0
        %461 = vmatpush2.msra.mxu0 0.0
        %462 = vmatprep.subr.mxu0 0.0
        %463 = vmatpush2.msra.mxu0 0.0
        %464 = vmatprep.subr.mxu0 0.0
        %465 = vmatpush2.msra.mxu0 0.0
        %466 = vmatprep.subr.mxu0 0.0
        %467 = vmatpush2.msra.mxu0 0.0
        %468 = vmatprep.subr.mxu0 0.0
        %469 = vmatpush2.msra.mxu0 0.0
        %470 = vmatprep.subr.mxu0 0.0
        %471 = vmatpush2.msra.mxu0 0.0
        %472 = vmatprep.subr.mxu0 0.0
        %473 = vmatpush2.msra.mxu0 0.0
        %474 = vmatprep.subr.mxu0 0.0
        %475 = vmatpush2.msra.mxu0 0.0
        %476 = vmatprep.subr.mxu0 0.0
        %477 = vmatpush2.msra.mxu0 0.0
        %478 = vmatprep.subr.mxu0 0.0
        %479 = vmatpush2.msra.mxu0 0.0
        %480 = vmatprep.subr.mxu0 0.0
        %481 = vmatpush2.msra.mxu0 0.0
        %482 = vmatprep.subr.mxu0 0.0
        %483 = vmatpush2.msra.mxu0 0.0
        %484 = vmatprep.subr.mxu0 0.0
        %485 = vmatpush2.msra.mxu0 0.0
        %486 = vmatprep.subr.mxu0 0.0
        %487 = vmatpush2.msra.mxu0 0.0
        %488 = vmatprep.subr.mxu0 0.0
        %489 = vmatpush2.msra.mxu0 0.0
        %490 = vmatprep.subr.mxu0 0.0
        %491 = vmatpush2.msra.mxu0 0.0
        %492 = vmatprep.mubr.f32.mxu0 0.0
        %493 = vmatmul.mubr.f32.gmra.mxu0 %v426
        %v494 = vpop.f32.mrf.mxu0
        %v495 = vadd.f32 0.0, %v494
        %v496 = vpop.f32.mrf.mxu0
        %497 = vdwg.mxu0
        %v498 = vld [vmem:[%s1 + $0x20] sm:$0xff]
        %v499 = vld [vmem:[%s1 + $0x28] sm:$0xff]
        %v500 = vld [vmem:[%s1 + $0x30] sm:$0xff]
        %v501 = vld [vmem:[%s1 + $0x38] sm:$0xff]
        %503 = vset.pattern.permute.xlu0 0
        %504 = vperm.xlu0 %503, %v498
        %v505 = vpop.permute.xlu0 %504
        %508 = vset.pattern.permute.xlu0 0
        %509 = vperm.xlu0 %508, %v499
        %v510 = vpop.permute.xlu0 %509
        %513 = vset.pattern.permute.xlu0 0
        %514 = vperm.xlu0 %513, %v500
        %v515 = vpop.permute.xlu0 %514
        %518 = vset.pattern.permute.xlu0 0
        %519 = vperm.xlu0 %518, %v501
        %v520 = vpop.permute.xlu0 %519
        %v522 = vadd.f32 %v374, %v505
        %v523 = vadd.f32 %v379, %v510
        %v524 = vadd.f32 %v384, %v515
        %v525 = vadd.f32 %v389, %v520
        %v526 = vmax.f32 %v522, 0.0
        %v527 = vmax.f32 %v523, 0.0
        %v528 = vmax.f32 %v524, 0.0
        %v529 = vmax.f32 %v525, 0.0
        %530 = vmatprep.subr.mxu0 0.0
        %531 = vmatpush1.msra.mxu0 0.0
        %532 = vmatprep.subr.mxu0 0.0
        %533 = vmatpush1.msra.mxu0 0.0
        %534 = vmatprep.subr.mxu0 0.0
        %535 = vmatpush1.msra.mxu0 0.0
        %536 = vmatprep.subr.mxu0 0.0
        %537 = vmatpush1.msra.mxu0 0.0
        %538 = vmatprep.subr.mxu0 0.0
        %539 = vmatpush1.msra.mxu0 0.0
        %540 = vmatprep.subr.mxu0 0.0
        %541 = vmatpush1.msra.mxu0 0.0
        %542 = vmatprep.subr.mxu0 0.0
        %543 = vmatpush1.msra.mxu0 0.0
        %544 = vmatprep.subr.mxu0 0.0
        %545 = vmatpush1.msra.mxu0 0.0
        %546 = vmatprep.subr.mxu0 0.0
        %547 = vmatpush1.msra.mxu0 0.0
        %548 = vmatprep.subr.mxu0 0.0
        %549 = vmatpush1.msra.mxu0 0.0
        %550 = vmatprep.subr.mxu0 0.0
        %551 = vmatpush1.msra.mxu0 0.0
        %552 = vmatprep.subr.mxu0 0.0
        %553 = vmatpush1.msra.mxu0 0.0
        %554 = vmatprep.subr.mxu0 0.0
        %555 = vmatpush1.msra.mxu0 %v529
        %556 = vmatprep.subr.mxu0 0.0
        %557 = vmatpush1.msra.mxu0 %v528
        %558 = vmatprep.subr.mxu0 0.0
        %559 = vmatpush1.msra.mxu0 %v527
        %560 = vmatprep.subr.mxu0 0.0
        %561 = vmatpush1.msra.mxu0 %v526
        %562 = vmatprep.subr.mxu0 0.0
        %563 = vmatpush2.msra.mxu0 0.0
        %564 = vmatprep.subr.mxu0 0.0
        %565 = vmatpush2.msra.mxu0 0.0
        %566 = vmatprep.subr.mxu0 0.0
        %567 = vmatpush2.msra.mxu0 0.0
        %568 = vmatprep.subr.mxu0 0.0
        %569 = vmatpush2.msra.mxu0 0.0
        %570 = vmatprep.subr.mxu0 0.0
        %571 = vmatpush2.msra.mxu0 0.0
        %572 = vmatprep.subr.mxu0 0.0
        %573 = vmatpush2.msra.mxu0 0.0
        %574 = vmatprep.subr.mxu0 0.0
        %575 = vmatpush2.msra.mxu0 0.0
        %576 = vmatprep.subr.mxu0 0.0
        %577 = vmatpush2.msra.mxu0 0.0
        %578 = vmatprep.subr.mxu0 0.0
        %579 = vmatpush2.msra.mxu0 0.0
        %580 = vmatprep.subr.mxu0 0.0
        %581 = vmatpush2.msra.mxu0 0.0
        %582 = vmatprep.subr.mxu0 0.0
        %583 = vmatpush2.msra.mxu0 0.0
        %584 = vmatprep.subr.mxu0 0.0
        %585 = vmatpush2.msra.mxu0 0.0
        %586 = vmatprep.subr.mxu0 0.0
        %587 = vmatpush2.msra.mxu0 0.0
        %588 = vmatprep.subr.mxu0 0.0
        %589 = vmatpush2.msra.mxu0 0.0
        %590 = vmatprep.subr.mxu0 0.0
        %591 = vmatpush2.msra.mxu0 0.0
        %592 = vmatprep.subr.mxu0 0.0
        %593 = vmatpush2.msra.mxu0 0.0
        %594 = vmatprep.mubr.f32.mxu0 0.0
        %595 = vmatmul.mubr.f32.gmra.mxu0 %v426
        %v596 = vpop.f32.mrf.mxu0
        %v597 = vadd.f32 0.0, %v596
        %v598 = vpop.f32.mrf.mxu0
        %599 = vdwg.mxu0
        %v600 = vld [vmem:[%s1 + $0x40] sm:$0xff]
        %v601 = vld [vmem:[%s1 + $0x48] sm:$0xff]
        %v602 = vld [vmem:[%s1 + $0x50] sm:$0xff]
        %v603 = vld [vmem:[%s1 + $0x58] sm:$0xff]
        %605 = vset.pattern.permute.xlu0 0
        %606 = vperm.xlu0 %605, %v600
        %v607 = vpop.permute.xlu0 %606
        %610 = vset.pattern.permute.xlu0 0
        %611 = vperm.xlu0 %610, %v601
        %v612 = vpop.permute.xlu0 %611
        %615 = vset.pattern.permute.xlu0 0
        %616 = vperm.xlu0 %615, %v602
        %v617 = vpop.permute.xlu0 %616
        %620 = vset.pattern.permute.xlu0 0
        %621 = vperm.xlu0 %620, %v603
        %v622 = vpop.permute.xlu0 %621
        %v624 = vadd.f32 %v374, %v607
        %v625 = vadd.f32 %v379, %v612
        %v626 = vadd.f32 %v384, %v617
        %v627 = vadd.f32 %v389, %v622
        %v628 = vmax.f32 %v624, 0.0
        %v629 = vmax.f32 %v625, 0.0
        %v630 = vmax.f32 %v626, 0.0
        %v631 = vmax.f32 %v627, 0.0
        %632 = vmatprep.subr.mxu0 0.0
        %633 = vmatpush1.msra.mxu0 0.0
        %634 = vmatprep.subr.mxu0 0.0
        %635 = vmatpush1.msra.mxu0 0.0
        %636 = vmatprep.subr.mxu0 0.0
        %637 = vmatpush1.msra.mxu0 0.0
        %638 = vmatprep.subr.mxu0 0.0
        %639 = vmatpush1.msra.mxu0 0.0
        %640 = vmatprep.subr.mxu0 0.0
        %641 = vmatpush1.msra.mxu0 0.0
        %642 = vmatprep.subr.mxu0 0.0
        %643 = vmatpush1.msra.mxu0 0.0
        %644 = vmatprep.subr.mxu0 0.0
        %645 = vmatpush1.msra.mxu0 0.0
        %646 = vmatprep.subr.mxu0 0.0
        %647 = vmatpush1.msra.mxu0 0.0
        %648 = vmatprep.subr.mxu0 0.0
        %649 = vmatpush1.msra.mxu0 0.0
        %650 = vmatprep.subr.mxu0 0.0
        %651 = vmatpush1.msra.mxu0 0.0
        %652 = vmatprep.subr.mxu0 0.0
        %653 = vmatpush1.msra.mxu0 0.0
        %654 = vmatprep.subr.mxu0 0.0
        %655 = vmatpush1.msra.mxu0 0.0
        %656 = vmatprep.subr.mxu0 0.0
        %657 = vmatpush1.msra.mxu0 %v631
        %658 = vmatprep.subr.mxu0 0.0
        %659 = vmatpush1.msra.mxu0 %v630
        %660 = vmatprep.subr.mxu0 0.0
        %661 = vmatpush1.msra.mxu0 %v629
        %662 = vmatprep.subr.mxu0 0.0
        %663 = vmatpush1.msra.mxu0 %v628
        %664 = vmatprep.subr.mxu0 0.0
        %665 = vmatpush2.msra.mxu0 0.0
        %666 = vmatprep.subr.mxu0 0.0
        %667 = vmatpush2.msra.mxu0 0.0
        %668 = vmatprep.subr.mxu0 0.0
        %669 = vmatpush2.msra.mxu0 0.0
        %670 = vmatprep.subr.mxu0 0.0
        %671 = vmatpush2.msra.mxu0 0.0
        %672 = vmatprep.subr.mxu0 0.0
        %673 = vmatpush2.msra.mxu0 0.0
        %674 = vmatprep.subr.mxu0 0.0
        %675 = vmatpush2.msra.mxu0 0.0
        %676 = vmatprep.subr.mxu0 0.0
        %677 = vmatpush2.msra.mxu0 0.0
        %678 = vmatprep.subr.mxu0 0.0
        %679 = vmatpush2.msra.mxu0 0.0
        %680 = vmatprep.subr.mxu0 0.0
        %681 = vmatpush2.msra.mxu0 0.0
        %682 = vmatprep.subr.mxu0 0.0
        %683 = vmatpush2.msra.mxu0 0.0
        %684 = vmatprep.subr.mxu0 0.0
        %685 = vmatpush2.msra.mxu0 0.0
        %686 = vmatprep.subr.mxu0 0.0
        %687 = vmatpush2.msra.mxu0 0.0
        %688 = vmatprep.subr.mxu0 0.0
        %689 = vmatpush2.msra.mxu0 0.0
        %690 = vmatprep.subr.mxu0 0.0
        %691 = vmatpush2.msra.mxu0 0.0
        %692 = vmatprep.subr.mxu0 0.0
        %693 = vmatpush2.msra.mxu0 0.0
        %694 = vmatprep.subr.mxu0 0.0
        %695 = vmatpush2.msra.mxu0 0.0
        %696 = vmatprep.mubr.f32.mxu0 0.0
        %697 = vmatmul.mubr.f32.gmra.mxu0 %v426
        %v698 = vpop.f32.mrf.mxu0
        %v699 = vadd.f32 0.0, %v698
        %v700 = vpop.f32.mrf.mxu0
        %701 = vdwg.mxu0
        %v702 = vld [vmem:[%s1 + $0x60] sm:$0xff]
        %v703 = vld [vmem:[%s1 + $0x68] sm:$0xff]
        %v704 = vld [vmem:[%s1 + $0x70] sm:$0xff]
        %v705 = vld [vmem:[%s1 + $0x78] sm:$0xff]
        %707 = vset.pattern.permute.xlu0 0
        %708 = vperm.xlu0 %707, %v702
        %v709 = vpop.permute.xlu0 %708
        %712 = vset.pattern.permute.xlu0 0
        %713 = vperm.xlu0 %712, %v703
        %v714 = vpop.permute.xlu0 %713
        %717 = vset.pattern.permute.xlu0 0
        %718 = vperm.xlu0 %717, %v704
        %v719 = vpop.permute.xlu0 %718
        %722 = vset.pattern.permute.xlu0 0
        %723 = vperm.xlu0 %722, %v705
        %v724 = vpop.permute.xlu0 %723
        %v726 = vadd.f32 %v374, %v709
        %v727 = vadd.f32 %v379, %v714
        %v728 = vadd.f32 %v384, %v719
        %v729 = vadd.f32 %v389, %v724
        %v730 = vmax.f32 %v726, 0.0
        %v731 = vmax.f32 %v727, 0.0
        %v732 = vmax.f32 %v728, 0.0
        %v733 = vmax.f32 %v729, 0.0
        %734 = vmatprep.subr.mxu0 0.0
        %735 = vmatpush1.msra.mxu0 0.0
        %736 = vmatprep.subr.mxu0 0.0
        %737 = vmatpush1.msra.mxu0 0.0
        %738 = vmatprep.subr.mxu0 0.0
        %739 = vmatpush1.msra.mxu0 0.0
        %740 = vmatprep.subr.mxu0 0.0
        %741 = vmatpush1.msra.mxu0 0.0
        %742 = vmatprep.subr.mxu0 0.0
        %743 = vmatpush1.msra.mxu0 0.0
        %744 = vmatprep.subr.mxu0 0.0
        %745 = vmatpush1.msra.mxu0 0.0
        %746 = vmatprep.subr.mxu0 0.0
        %747 = vmatpush1.msra.mxu0 0.0
        %748 = vmatprep.subr.mxu0 0.0
        %749 = vmatpush1.msra.mxu0 0.0
        %750 = vmatprep.subr.mxu0 0.0
        %751 = vmatpush1.msra.mxu0 0.0
        %752 = vmatprep.subr.mxu0 0.0
        %753 = vmatpush1.msra.mxu0 0.0
        %754 = vmatprep.subr.mxu0 0.0
        %755 = vmatpush1.msra.mxu0 0.0
        %756 = vmatprep.subr.mxu0 0.0
        %757 = vmatpush1.msra.mxu0 0.0
        %758 = vmatprep.subr.mxu0 0.0
        %759 = vmatpush1.msra.mxu0 %v733
        %760 = vmatprep.subr.mxu0 0.0
        %761 = vmatpush1.msra.mxu0 %v732
        %762 = vmatprep.subr.mxu0 0.0
        %763 = vmatpush1.msra.mxu0 %v731
        %764 = vmatprep.subr.mxu0 0.0
        %765 = vmatpush1.msra.mxu0 %v730
        %766 = vmatprep.subr.mxu0 0.0
        %767 = vmatpush2.msra.mxu0 0.0
        %768 = vmatprep.subr.mxu0 0.0
        %769 = vmatpush2.msra.mxu0 0.0
        %770 = vmatprep.subr.mxu0 0.0
        %771 = vmatpush2.msra.mxu0 0.0
        %772 = vmatprep.subr.mxu0 0.0
        %773 = vmatpush2.msra.mxu0 0.0
        %774 = vmatprep.subr.mxu0 0.0
        %775 = vmatpush2.msra.mxu0 0.0
        %776 = vmatprep.subr.mxu0 0.0
        %777 = vmatpush2.msra.mxu0 0.0
        %778 = vmatprep.subr.mxu0 0.0
        %779 = vmatpush2.msra.mxu0 0.0
        %780 = vmatprep.subr.mxu0 0.0
        %781 = vmatpush2.msra.mxu0 0.0
        %782 = vmatprep.subr.mxu0 0.0
        %783 = vmatpush2.msra.mxu0 0.0
        %784 = vmatprep.subr.mxu0 0.0
        %785 = vmatpush2.msra.mxu0 0.0
        %786 = vmatprep.subr.mxu0 0.0
        %787 = vmatpush2.msra.mxu0 0.0
        %788 = vmatprep.subr.mxu0 0.0
        %789 = vmatpush2.msra.mxu0 0.0
        %790 = vmatprep.subr.mxu0 0.0
        %791 = vmatpush2.msra.mxu0 0.0
        %792 = vmatprep.subr.mxu0 0.0
        %793 = vmatpush2.msra.mxu0 0.0
        %794 = vmatprep.subr.mxu0 0.0
        %795 = vmatpush2.msra.mxu0 0.0
        %796 = vmatprep.subr.mxu0 0.0
        %797 = vmatpush2.msra.mxu0 0.0
        %798 = vmatprep.mubr.f32.mxu0 0.0
        %799 = vmatmul.mubr.f32.gmra.mxu0 %v426
        %v800 = vpop.f32.mrf.mxu0
        %v801 = vadd.f32 0.0, %v800
        %v802 = vpop.f32.mrf.mxu0
        %803 = vdwg.mxu0
        %v805 = vrot.slane %v597, 7
        %v808 = vrot.slane %v699, 6
        %v811 = vrot.slane %v801, 5
        %vm813 = vcmask 1040384
        %v814 = vsel %vm813, %v495, %v805
        %vm815 = vcmask 1041408
        %v816 = vsel %vm815, %v814, %v808
        %vm817 = vcmask 1042432
        %v818 = vsel %vm817, %v816, %v811
        %s819 = sld [smem:[#allocation2]]
        %v820 = vstv %s819
        %v821 = vadd.f32 %v818, %v820
        %822 = vst [vmem:[%s219] sm:$0xf] %v821
        %s823 = sand.u32 %s138, 1
        %s824 = scalar_lea.sflag [#allocation4], %s823
        %s825 = sand.u32 %s138, 1
        %s826 = smul.addr %s825, 4
        %s827 = scalar_lea.vmem [#allocation3], %s826
        // Predicated region
        $region41: #{tpu_custom_call.1} parent=39 // pred_check
          %p828 = pneg %p148
        $region42: #{tpu_custom_call.1} parent=39 // pred_check_branch
          %830 = sbr.rel (%p828) target = $region44
        $region43: #{tpu_custom_call.1} parent=39 // pred_region
          %s832 = ssub.s32 64, 64
          %833 = vsyncadd %s824, %s832
          %s834 = smul.addr %s20, 64
          %s835 = scalar_lea.hbm %s5, %s834
          %s837 = sshll.u32 %s827, 4
          %s838 = int_to_ptr.vmem [resolvable:$true] %s837
          %840 = dma.vmem_to_hbm [thread:$0]  %s838, 64, %s835, %s824
        $region44: #{tpu_custom_call.1} parent=39 // pred_fallthru
          _
      $region40: #{tpu_custom_call.1} parent=5 // pred_fallthru
        _
      %p841 = scmp.le.s32.totalorder 2, %s15
      // Predicated region
      $region45: #{tpu_custom_call.1} parent=5 // pred_check
        %p842 = pneg %p841
      $region46: #{tpu_custom_call.1} parent=5 // pred_check_branch
        %844 = sbr.rel (%p842) target = $region48
      $region47: #{tpu_custom_call.1} parent=5 // pred_region
        %s845 = ssub.s32 %s15, 2
        // Predicated region
        $region49: #{tpu_custom_call.1} parent=47 // pred_check
          %p846 = pneg %p154
        $region50: #{tpu_custom_call.1} parent=47 // pred_check_branch
          %848 = sbr.rel (%p846) target = $region52
        $region51: #{tpu_custom_call.1} parent=47 // pred_region
          %s849 = sand.u32 %s139, 1
          %s850 = scalar_lea.sflag [#allocation4], %s849
          %s851 = sand.u32 %s139, 1
          %s852 = smul.addr %s851, 4
          %s853 = scalar_lea.vmem [#allocation3], %s852
          %854 = dma.done %s850, 64
        $region52: #{tpu_custom_call.1} parent=47 // pred_fallthru
          _
      $region48: #{tpu_custom_call.1} parent=5 // pred_fallthru
        _
    $region6: #{tpu_custom_call.1} parent=1 // loop_footer
      %s19 = sadd.s32 1, %s15
    $region7: #{tpu_custom_call.1} parent=1 // loop_footer_branch
      %14 = sbr.rel target = $region3
    $region8: #{tpu_custom_call.1} parent=1 // loop_exit
      _
    %855 = vsyncpa [#allocation4], 1
    %s856 = scalar_lea.sflag [#allocation4], 1
    %857 = vsyncpa %s856, 1

</llo_original>
